<compile_context>
chip_gen: v5e
topology: v5e:2x2
jax: 0.10.0
libtpu: 0.0.40
codegen_flags: <defaults>
</compile_context>

<pallas_src>
import jax
import jax.numpy as jnp
from jax.experimental import pallas as pl
from jax.experimental.pallas import tpu as pltpu

EPS = 1e-5
C = 16                      # fixed by the module: BatchNorm2d(16), Conv2d(16, 16, 1)
RESIDENT_MAX_BYTES = 4 << 20  # single-kernel VMEM-resident path when x fits


def _vmem_limit_bytes():
    """Scoped-VMEM request derived from physical capacity (v7x: 64 MiB/TC)."""
    try:
        cap = pltpu.get_tpu_info().vmem_capacity_bytes
    except Exception:  # pragma: no cover - conservative fallback
        cap = 64 << 20
    return min(64 << 20, max(32 << 20, cap // 2))


def _pick_tiles(n_batch, hw, tile_bytes):
    """Choose (NB, T): batch-block and spatial-tile sizes.

    T always divides hw (multiple of 128, or the full extent) so no masked
    tails are needed; NB always divides n_batch.  Targets ~tile_bytes per
    (NB, C, T) f32 block.
    """
    row_bytes = C * 4
    t_cap = max(128, tile_bytes // row_bytes)
    if hw % 128 != 0 or hw <= t_cap:
        t = hw                                   # full spatial extent (always legal)
    else:
        q = hw // 128
        divs = sorted({d for i in range(1, int(q ** 0.5) + 1) if q % i == 0
                       for d in (i, q // i)})
        under = [d for d in divs if 128 * d <= t_cap]
        over = [d for d in divs if 128 * d > t_cap]
        t = 128 * under[-1]
        # Divisor cliff: if the best divisor is far below target, take the next
        # one above it (bounded by 2x the byte target).
        if t < t_cap // 4 and over and 128 * over[0] * row_bytes <= 2 * tile_bytes:
            t = 128 * over[0]
    # Block several batch elements per step when one (C, T) slab is small.
    slab = C * t * 4
    nb_cap = max(1, min(16, tile_bytes // slab))  # 16 = static-unroll cap in pass 2
    nb = 1
    for d in range(1, min(n_batch, nb_cap) + 1):
        if n_batch % d == 0:
            nb = d
    return nb, t


# ---------------------------------------------------------------------------
# Single-kernel VMEM-resident path (x fully resident; 2x sizeof(x) HBM traffic)
# ---------------------------------------------------------------------------
def _make_resident_kernel(n_batch, inv_count):
    def kernel(gamma_ref, beta_ref, w_ref, b_ref, x_ref, o_ref):
        # Per-channel batch statistics from the resident copy.
        def stats_body(n, carry):
            s, sq = carry
            xn = x_ref[n]                                     # (C, HW)
            s = s + jnp.sum(xn, axis=1, keepdims=True)
            sq = sq + jnp.sum(xn * xn, axis=1, keepdims=True)
            return s, sq

        init = (jnp.zeros((C, 1), jnp.float32), jnp.zeros((C, 1), jnp.float32))
        s, sq = jax.lax.fori_loop(0, n_batch, stats_body, init,
                                  unroll=n_batch <= 4)

        mean = s * inv_count
        var = jnp.maximum(sq * inv_count - mean * mean, 0.0)   # biased (training) var
        scale = gamma_ref[...] * jax.lax.rsqrt(var + EPS)      # (C, 1)
        shift = beta_ref[...] - mean * scale                   # (C, 1)
        w = w_ref[...]                                         # (C_out, C_in)
        b = b_ref[...]                                         # (C, 1)

        # Affine + ReLU + 1x1 conv (MXU matmul) per batch element.
        def out_body(n, _):
            y = jnp.maximum(x_ref[n] * scale + shift, 0.0)     # (C, HW)
            o_ref[n] = (jnp.dot(w, y, preferred_element_type=jnp.float32)
                        + b).astype(o_ref.dtype)
            return 0

        jax.lax.fori_loop(0, n_batch, out_body, 0, unroll=n_batch <= 4)

    return kernel


# ---------------------------------------------------------------------------
# Two-pass tiled path
# ---------------------------------------------------------------------------
def _stats_kernel(x_ref, sum_ref, sq_ref):
    # (1, C, 1) partials stay VMEM-resident across the spatial ("arbitrary") axis.
    @pl.when(pl.program_id(1) == 0)
    def _():
        sum_ref[...] = jnp.zeros_like(sum_ref)
        sq_ref[...] = jnp.zeros_like(sq_ref)

    x = x_ref[...]                                            # (NB, C, T)
    s = jnp.sum(x, axis=2, keepdims=True)                     # (NB, C, 1) lane reduce
    sq = jnp.sum(x * x, axis=2, keepdims=True)
    sum_ref[...] += jnp.sum(s, axis=0, keepdims=True)         # (1, C, 1)
    sq_ref[...] += jnp.sum(sq, axis=0, keepdims=True)


def _make_fused_kernel(nb, inv_count):
    def kernel(psum_ref, psq_ref, gamma_ref, beta_ref, w_ref, b_ref, x_ref, o_ref):
        # Finish the tiny (NBLK, C, 1) -> (C, 1) reduction and derive the BN
        # affine in-kernel (16 rsqrt on the EUP slot is free); no intervening
        # XLA ops between the two pallas_calls.
        s = jnp.sum(psum_ref[...], axis=0)                    # (C, 1)
        sq = jnp.sum(psq_ref[...], axis=0)                    # (C, 1)
        mean = s * inv_count
        var = jnp.maximum(sq * inv_count - mean * mean, 0.0)
        scale = gamma_ref[...] * jax.lax.rsqrt(var + EPS)     # (C, 1)
        shift = beta_ref[...] - mean * scale                  # (C, 1)
        w = w_ref[...]
        b = b_ref[...]
        for i in range(nb):                                   # nb is static, <= 16
            y = jnp.maximum(x_ref[i] * scale + shift, 0.0)    # (C, T)
            o_ref[i] = (jnp.dot(w, y, preferred_element_type=jnp.float32)
                        + b).astype(o_ref.dtype)

    return kernel


def module2_forward(x_nchw, gamma, beta, conv_w, conv_b, *,
                    force_two_pass=False, tile_bytes=2 << 20):
    """x_nchw: (N, 16, H, W) float32 -> (N, 16, H, W) float32."""
    N, c, H, W = x_nchw.shape
    assert c == C
    HW = H * W
    inv_count = 1.0 / float(N * HW)
    vmem_limit = _vmem_limit_bytes()

    x3 = x_nchw.reshape(N, C, HW).astype(jnp.float32)    # free NCHW-native view
    gamma2d = gamma.reshape(C, 1).astype(jnp.float32)
    beta2d = beta.reshape(C, 1).astype(jnp.float32)
    w2d = conv_w.reshape(C, C).astype(jnp.float32)       # (C_out, C_in)
    b2d = conv_b.reshape(C, 1).astype(jnp.float32)

    x_bytes = 4 * N * C * HW

    # ---- VMEM-resident single-kernel path ------------------------------------
    if (not force_two_pass) and x_bytes <= RESIDENT_MAX_BYTES:
        out3 = pl.pallas_call(
            _make_resident_kernel(N, inv_count),
            out_shape=jax.ShapeDtypeStruct((N, C, HW), jnp.float32),
            grid=(1,),
            in_specs=[
                pl.BlockSpec((C, 1), lambda i: (0, 0)),        # gamma
                pl.BlockSpec((C, 1), lambda i: (0, 0)),        # beta
                pl.BlockSpec((C, C), lambda i: (0, 0)),        # conv weight
                pl.BlockSpec((C, 1), lambda i: (0, 0)),        # conv bias
                pl.BlockSpec((N, C, HW), lambda i: (0, 0, 0)),  # full x, resident
            ],
            out_specs=pl.BlockSpec((N, C, HW), lambda i: (0, 0, 0)),
            compiler_params=pltpu.CompilerParams(
                dimension_semantics=("arbitrary",),
                vmem_limit_bytes=vmem_limit),
            cost_estimate=pl.CostEstimate(
                flops=N * HW * C * (2 * C + 6), transcendentals=C,
                bytes_accessed=8 * N * C * HW),
        )(gamma2d, beta2d, w2d, b2d, x3)
        return out3.reshape(N, C, H, W)

    # ---- Two-pass tiled path --------------------------------------------------
    NB, T = _pick_tiles(N, HW, tile_bytes)
    NBLK, NSPT = N // NB, HW // T

    # pass 1: per-batch-block partial sums / sum-of-squares
    psum, psq = pl.pallas_call(
        _stats_kernel,
        out_shape=(jax.ShapeDtypeStruct((NBLK, C, 1), jnp.float32),
                   jax.ShapeDtypeStruct((NBLK, C, 1), jnp.float32)),
        grid=(NBLK, NSPT),
        in_specs=[pl.BlockSpec((NB, C, T), lambda b, j: (b, 0, j))],
        out_specs=(pl.BlockSpec((1, C, 1), lambda b, j: (b, 0, 0)),
                   pl.BlockSpec((1, C, 1), lambda b, j: (b, 0, 0))),
        compiler_params=pltpu.CompilerParams(
            dimension_semantics=("parallel", "arbitrary"),
            vmem_limit_bytes=vmem_limit),
        cost_estimate=pl.CostEstimate(
            flops=3 * N * HW * C, transcendentals=0,
            bytes_accessed=4 * N * C * HW + 8 * NBLK * C),
    )(x3)

    # pass 2: BN affine (derived in-kernel from the partials) + ReLU + 1x1 conv
    out3 = pl.pallas_call(
        _make_fused_kernel(NB, inv_count),
        out_shape=jax.ShapeDtypeStruct((N, C, HW), jnp.float32),
        grid=(NBLK, NSPT),
        in_specs=[
            pl.BlockSpec((NBLK, C, 1), lambda b, j: (0, 0, 0)),  # sum partials
            pl.BlockSpec((NBLK, C, 1), lambda b, j: (0, 0, 0)),  # sumsq partials
            pl.BlockSpec((C, 1), lambda b, j: (0, 0)),           # gamma
            pl.BlockSpec((C, 1), lambda b, j: (0, 0)),           # beta
            pl.BlockSpec((C, C), lambda b, j: (0, 0)),           # conv weight
            pl.BlockSpec((C, 1), lambda b, j: (0, 0)),           # conv bias
            pl.BlockSpec((NB, C, T), lambda b, j: (b, 0, j)),    # x tile (lane-dense)
        ],
        out_specs=pl.BlockSpec((NB, C, T), lambda b, j: (b, 0, j)),
        compiler_params=pltpu.CompilerParams(
            dimension_semantics=("parallel", "parallel"),
            vmem_limit_bytes=vmem_limit),
        cost_estimate=pl.CostEstimate(
            flops=N * HW * C * (2 * C + 3),
            transcendentals=C * NBLK * NSPT,
            bytes_accessed=8 * N * C * HW),
    )(psum, psq, gamma2d, beta2d, w2d, b2d, x3)

    return out3.reshape(N, C, H, W)


def _reference(x_nchw, gamma, beta, conv_w, conv_b):
    # Pure-JAX reference: BatchNorm2d (training mode) -> ReLU -> Conv2d 1x1
    mean = jnp.mean(x_nchw, axis=(0, 2, 3), keepdims=True)
    var = jnp.mean(jnp.square(x_nchw - mean), axis=(0, 2, 3), keepdims=True)
    xn = (x_nchw - mean) * jax.lax.rsqrt(var + EPS)
    y = xn * gamma.reshape(1, -1, 1, 1) + beta.reshape(1, -1, 1, 1)
    y = jnp.maximum(y, 0.0)
    out = jnp.einsum("nchw,oc->nohw", y, conv_w.reshape(C, C))
    return out + conv_b.reshape(1, -1, 1, 1)


if __name__ == "__main__":
    key = jax.random.PRNGKey(0)
    k_x, k_w, k_b, k_g, k_be, k_x2 = jax.random.split(key, 6)

    # Small shapes consistent with the module: channels must be 16.
    N, H, W = 2, 16, 16
    x = jax.random.normal(k_x, (N, C, H, W), dtype=jnp.float32)
    gamma = 1.0 + 0.1 * jax.random.normal(k_g, (C,), dtype=jnp.float32)
    beta = 0.1 * jax.random.normal(k_be, (C,), dtype=jnp.float32)
    bound = 1.0 / (C ** 0.5)
    conv_w = jax.random.uniform(k_w, (C, C, 1, 1), jnp.float32, -bound, bound)
    conv_b = jax.random.uniform(k_b, (C,), jnp.float32, -bound, bound)

    ref = jax.block_until_ready(_reference(x, gamma, beta, conv_w, conv_b))

    # 1) Default dispatch: VMEM-resident single-kernel path (x = 32 KiB).
    out1 = jax.block_until_ready(module2_forward(x, gamma, beta, conv_w, conv_b))
    assert out1.shape == (N, C, H, W)
    assert jnp.allclose(out1, ref, atol=1e-4, rtol=1e-4)

    # 2) Two-pass tiled path on the same input (exercises batch blocking NB=2).
    out2 = jax.block_until_ready(
        module2_forward(x, gamma, beta, conv_w, conv_b, force_two_pass=True))
    assert jnp.allclose(out2, ref, atol=1e-4, rtol=1e-4)

    # 3) Two-pass tiled path with a multi-step (2, 4) grid: small tile target
    #    so a (2, 16, 32, 32) input splits along batch and spatial axes.
    xb = jax.random.normal(k_x2, (2, C, 32, 32), dtype=jnp.float32)
    refb = jax.block_until_ready(_reference(xb, gamma, beta, conv_w, conv_b))
    outb = jax.block_until_ready(
        module2_forward(xb, gamma, beta, conv_w, conv_b,
                        force_two_pass=True, tile_bytes=16 * 1024))
    assert jnp.allclose(outb, refb, atol=1e-4, rtol=1e-4)

    print("KERNEL_OK")
</pallas_src>

<mosaic_0001>
module attributes {stable_mosaic.version = 11 : i64} {
  func.func @kernel(%arg0: i32, %arg1: memref<16x1xf32, #tpu.memory_space<vmem>>, %arg2: memref<16x1xf32, #tpu.memory_space<vmem>>, %arg3: memref<16x16xf32, #tpu.memory_space<vmem>>, %arg4: memref<16x1xf32, #tpu.memory_space<vmem>>, %arg5: memref<2x16x256xf32, #tpu.memory_space<vmem>>, %arg6: memref<2x16x256xf32, #tpu.memory_space<vmem>>) attributes {dimension_semantics = [#tpu.dimension_semantics<arbitrary>], iteration_bounds = array<i64: 1>, scalar_prefetch = 0 : i64, scratch_operands = 0 : i64, tpu.core_type = #tpu.core_type<tc>, window_params = [{pipeline_mode = #tpu.pipeline_mode<synchronous>, transform_indices = @transform_0, window_bounds = array<i64: 16, 1>}, {pipeline_mode = #tpu.pipeline_mode<synchronous>, transform_indices = @transform_1, window_bounds = array<i64: 16, 1>}, {pipeline_mode = #tpu.pipeline_mode<synchronous>, transform_indices = @transform_2, window_bounds = array<i64: 16, 16>}, {pipeline_mode = #tpu.pipeline_mode<synchronous>, transform_indices = @transform_3, window_bounds = array<i64: 16, 1>}, {pipeline_mode = #tpu.pipeline_mode<synchronous>, transform_indices = @transform_4, window_bounds = array<i64: 2, 16, 256>}, {pipeline_mode = #tpu.pipeline_mode<synchronous>, transform_indices = @transform_5, window_bounds = array<i64: 2, 16, 256>}]} {
    %cst = arith.constant 0.000000e+00 : f32
    %0 = vector.broadcast %cst : f32 to vector<16x1xf32>
    %cst_0 = arith.constant 0.000000e+00 : f32
    %1 = vector.broadcast %cst_0 : f32 to vector<16x1xf32>
    %c0_i32 = arith.constant 0 : i32
    %2 = arith.index_cast %c0_i32 : i32 to index
    %c0 = arith.constant 0 : index
    %c0_1 = arith.constant 0 : index
    %3 = vector.load %arg5[%2, %c0, %c0_1] : memref<2x16x256xf32, #tpu.memory_space<vmem>>, vector<1x16x256xf32>
    %4 = vector.shape_cast %3 : vector<1x16x256xf32> to vector<16x256xf32>
    %cst_2 = arith.constant dense<0.000000e+00> : vector<16xf32>
    %5 = vector.multi_reduction <add>, %4, %cst_2 [1] : vector<16x256xf32> to vector<16xf32>
    %6 = vector.shape_cast %5 : vector<16xf32> to vector<16x1xf32>
    %7 = arith.addf %0, %6 : vector<16x1xf32>
    %8 = arith.mulf %4, %4 : vector<16x256xf32>
    %cst_3 = arith.constant dense<0.000000e+00> : vector<16xf32>
    %9 = vector.multi_reduction <add>, %8, %cst_3 [1] : vector<16x256xf32> to vector<16xf32>
    %10 = vector.shape_cast %9 : vector<16xf32> to vector<16x1xf32>
    %11 = arith.addf %1, %10 : vector<16x1xf32>
    %c1_i32 = arith.constant 1 : i32
    %12 = arith.index_cast %c1_i32 : i32 to index
    %c0_4 = arith.constant 0 : index
    %c0_5 = arith.constant 0 : index
    %13 = vector.load %arg5[%12, %c0_4, %c0_5] : memref<2x16x256xf32, #tpu.memory_space<vmem>>, vector<1x16x256xf32>
    %14 = vector.shape_cast %13 : vector<1x16x256xf32> to vector<16x256xf32>
    %cst_6 = arith.constant dense<0.000000e+00> : vector<16xf32>
    %15 = vector.multi_reduction <add>, %14, %cst_6 [1] : vector<16x256xf32> to vector<16xf32>
    %16 = vector.shape_cast %15 : vector<16xf32> to vector<16x1xf32>
    %17 = arith.addf %7, %16 : vector<16x1xf32>
    %18 = arith.mulf %14, %14 : vector<16x256xf32>
    %cst_7 = arith.constant dense<0.000000e+00> : vector<16xf32>
    %19 = vector.multi_reduction <add>, %18, %cst_7 [1] : vector<16x256xf32> to vector<16xf32>
    %20 = vector.shape_cast %19 : vector<16xf32> to vector<16x1xf32>
    %21 = arith.addf %11, %20 : vector<16x1xf32>
    %c2_i32 = arith.constant 2 : i32
    %cst_8 = arith.constant 0.001953125 : f32
    %22 = vector.broadcast %cst_8 : f32 to vector<16x1xf32>
    %23 = arith.mulf %17, %22 : vector<16x1xf32>
    %cst_9 = arith.constant 0.001953125 : f32
    %24 = vector.broadcast %cst_9 : f32 to vector<16x1xf32>
    %25 = arith.mulf %21, %24 : vector<16x1xf32>
    %26 = arith.mulf %23, %23 : vector<16x1xf32>
    %27 = arith.subf %25, %26 : vector<16x1xf32>
    %cst_10 = arith.constant 0.000000e+00 : f32
    %28 = vector.broadcast %cst_10 : f32 to vector<16x1xf32>
    %29 = arith.maximumf %27, %28 : vector<16x1xf32>
    %c0_11 = arith.constant 0 : index
    %c0_12 = arith.constant 0 : index
    %30 = vector.load %arg1[%c0_11, %c0_12] : memref<16x1xf32, #tpu.memory_space<vmem>>, vector<16x1xf32>
    %cst_13 = arith.constant 9.99999974E-6 : f32
    %31 = vector.broadcast %cst_13 : f32 to vector<16x1xf32>
    %32 = arith.addf %29, %31 : vector<16x1xf32>
    %33 = math.rsqrt %32 : vector<16x1xf32>
    %34 = arith.mulf %30, %33 : vector<16x1xf32>
    %c0_14 = arith.constant 0 : index
    %c0_15 = arith.constant 0 : index
    %35 = vector.load %arg2[%c0_14, %c0_15] : memref<16x1xf32, #tpu.memory_space<vmem>>, vector<16x1xf32>
    %36 = arith.mulf %23, %34 : vector<16x1xf32>
    %37 = arith.subf %35, %36 : vector<16x1xf32>
    %c0_16 = arith.constant 0 : index
    %c0_17 = arith.constant 0 : index
    %38 = vector.load %arg3[%c0_16, %c0_17] : memref<16x16xf32, #tpu.memory_space<vmem>>, vector<16x16xf32>
    %c0_18 = arith.constant 0 : index
    %c0_19 = arith.constant 0 : index
    %39 = vector.load %arg4[%c0_18, %c0_19] : memref<16x1xf32, #tpu.memory_space<vmem>>, vector<16x1xf32>
    %c0_i32_20 = arith.constant 0 : i32
    %40 = arith.index_cast %c0_i32_20 : i32 to index
    %c0_21 = arith.constant 0 : index
    %c0_22 = arith.constant 0 : index
    %41 = vector.load %arg5[%40, %c0_21, %c0_22] : memref<2x16x256xf32, #tpu.memory_space<vmem>>, vector<1x16x256xf32>
    %42 = vector.shape_cast %41 : vector<1x16x256xf32> to vector<16x256xf32>
    %43 = vector.broadcast %34 : vector<16x1xf32> to vector<16x256xf32>
    %44 = arith.mulf %42, %43 : vector<16x256xf32>
    %45 = vector.broadcast %37 : vector<16x1xf32> to vector<16x256xf32>
    %46 = arith.addf %44, %45 : vector<16x256xf32>
    %cst_23 = arith.constant 0.000000e+00 : f32
    %47 = vector.broadcast %cst_23 : f32 to vector<16x256xf32>
    %48 = arith.maximumf %46, %47 : vector<16x256xf32>
    %cst_24 = arith.constant dense<0.000000e+00> : vector<16x256xf32>
    %49 = tpu.matmul %38, %48, %cst_24 {dimension_numbers = #tpu.dot_dimension_numbers<[1], [0], [0], [1], [0, 0, 1, 1], [], []>} : vector<16x16xf32>, vector<16x256xf32>, vector<16x256xf32> -> vector<16x256xf32>
    %50 = vector.broadcast %39 : vector<16x1xf32> to vector<16x256xf32>
    %51 = arith.addf %49, %50 : vector<16x256xf32>
    %52 = arith.index_cast %c0_i32_20 : i32 to index
    %c0_25 = arith.constant 0 : index
    %c0_26 = arith.constant 0 : index
    %53 = vector.load %arg6[%52, %c0_25, %c0_26] : memref<2x16x256xf32, #tpu.memory_space<vmem>>, vector<1x16x256xf32>
    %54 = vector.shape_cast %53 : vector<1x16x256xf32> to vector<16x256xf32>
    %55 = vector.shape_cast %51 : vector<16x256xf32> to vector<1x16x256xf32>
    tpu.vector_store %arg6[%52, %c0_25, %c0_26], %55 {strides = array<i32>} : memref<2x16x256xf32, #tpu.memory_space<vmem>>, vector<1x16x256xf32>,
    %c1_i32_27 = arith.constant 1 : i32
    %56 = arith.index_cast %c1_i32_27 : i32 to index
    %c0_28 = arith.constant 0 : index
    %c0_29 = arith.constant 0 : index
    %57 = vector.load %arg5[%56, %c0_28, %c0_29] : memref<2x16x256xf32, #tpu.memory_space<vmem>>, vector<1x16x256xf32>
    %58 = vector.shape_cast %57 : vector<1x16x256xf32> to vector<16x256xf32>
    %59 = vector.broadcast %34 : vector<16x1xf32> to vector<16x256xf32>
    %60 = arith.mulf %58, %59 : vector<16x256xf32>
    %61 = vector.broadcast %37 : vector<16x1xf32> to vector<16x256xf32>
    %62 = arith.addf %60, %61 : vector<16x256xf32>
    %cst_30 = arith.constant 0.000000e+00 : f32
    %63 = vector.broadcast %cst_30 : f32 to vector<16x256xf32>
    %64 = arith.maximumf %62, %63 : vector<16x256xf32>
    %cst_31 = arith.constant dense<0.000000e+00> : vector<16x256xf32>
    %65 = tpu.matmul %38, %64, %cst_31 {dimension_numbers = #tpu.dot_dimension_numbers<[1], [0], [0], [1], [0, 0, 1, 1], [], []>} : vector<16x16xf32>, vector<16x256xf32>, vector<16x256xf32> -> vector<16x256xf32>
    %66 = vector.broadcast %39 : vector<16x1xf32> to vector<16x256xf32>
    %67 = arith.addf %65, %66 : vector<16x256xf32>
    %68 = arith.index_cast %c1_i32_27 : i32 to index
    %c0_32 = arith.constant 0 : index
    %c0_33 = arith.constant 0 : index
    %69 = vector.load %arg6[%68, %c0_32, %c0_33] : memref<2x16x256xf32, #tpu.memory_space<vmem>>, vector<1x16x256xf32>
    %70 = vector.shape_cast %69 : vector<1x16x256xf32> to vector<16x256xf32>
    %71 = vector.shape_cast %67 : vector<16x256xf32> to vector<1x16x256xf32>
    tpu.vector_store %arg6[%68, %c0_32, %c0_33], %71 {strides = array<i32>} : memref<2x16x256xf32, #tpu.memory_space<vmem>>, vector<1x16x256xf32>,
    %c2_i32_34 = arith.constant 2 : i32
    return
  }
  func.func @transform_0(%arg0: i32) -> (i32, i32) {
    %c0_i32 = arith.constant 0 : i32
    %c0_i32_0 = arith.constant 0 : i32
    %c0_i32_1 = arith.constant 0 : i32
    return %c0_i32, %c0_i32_0 : i32, i32
  }
  func.func @transform_1(%arg0: i32) -> (i32, i32) {
    %c0_i32 = arith.constant 0 : i32
    %c0_i32_0 = arith.constant 0 : i32
    %c0_i32_1 = arith.constant 0 : i32
    return %c0_i32, %c0_i32_0 : i32, i32
  }
  func.func @transform_2(%arg0: i32) -> (i32, i32) {
    %c0_i32 = arith.constant 0 : i32
    %c0_i32_0 = arith.constant 0 : i32
    %c0_i32_1 = arith.constant 0 : i32
    return %c0_i32, %c0_i32_0 : i32, i32
  }
  func.func @transform_3(%arg0: i32) -> (i32, i32) {
    %c0_i32 = arith.constant 0 : i32
    %c0_i32_0 = arith.constant 0 : i32
    %c0_i32_1 = arith.constant 0 : i32
    return %c0_i32, %c0_i32_0 : i32, i32
  }
  func.func @transform_4(%arg0: i32) -> (i32, i32, i32) {
    %c0_i32 = arith.constant 0 : i32
    %c0_i32_0 = arith.constant 0 : i32
    %c0_i32_1 = arith.constant 0 : i32
    %c0_i32_2 = arith.constant 0 : i32
    return %c0_i32, %c0_i32_0, %c0_i32_1 : i32, i32, i32
  }
  func.func @transform_5(%arg0: i32) -> (i32, i32, i32) {
    %c0_i32 = arith.constant 0 : i32
    %c0_i32_0 = arith.constant 0 : i32
    %c0_i32_1 = arith.constant 0 : i32
    %c0_i32_2 = arith.constant 0 : i32
    return %c0_i32, %c0_i32_0, %c0_i32_1 : i32, i32, i32
  }
}

</mosaic_0001>

<llo_original>
// kernel: tpu_custom_call.1
$region0: #{tpu_custom_call.1}
  #allocation0 [shape = 'u32[]', space=smem, size = 0x4, offset = 0x4, fixed_abs, tag = 'smem constant byte address 0x4 - core index']
  #allocation1 [shape = 'u32[72,128]{1,0:T(1,128)}', space=vmem, size = 0x9000, scoped, tag = 'internal scratch']
  %s0 = inlined_call_operand.vmem [shape: f32[16,1], index: 0, kind: input, shape index: {}]
  %s1 = inlined_call_operand.vmem [shape: f32[16,1], index: 1, kind: input, shape index: {}]
  %s2 = inlined_call_operand.vmem [shape: f32[16,16], index: 2, kind: input, shape index: {}]
  %s3 = inlined_call_operand.vmem [shape: f32[16,1], index: 3, kind: input, shape index: {}]
  %s4 = inlined_call_operand.hbm [shape: f32[2,16,256], index: 4, kind: input, shape index: {}]
  %s5 = inlined_call_operand.hbm [shape: f32[2,16,256], index: 5, kind: output, shape index: {}]
  %s6 = sld [smem:[#allocation0]]
  $region34: #{tpu_custom_call.1} parent=0
    _
  %s8 = ssub.s32 1, %s6
  %s9 = scalar_select 0, %s8, %s6
  $region1: #{tpu_custom_call.1} parent=0
    #allocation2 [shape = 'u8[32768]{0}', space=vmem, size = 0x8000, scoped, tag = 'input window, operand 4, single buffered']
    #allocation3 [shape = 's32[1]{0}', space=sflag, size = 0x4, scoped, tag = 'scoped memory for tpu_custom_call.1']
    #allocation4 [shape = 's32[1]{0}', space=sflag, size = 0x4, scoped, tag = 'scoped memory for tpu_custom_call.1']
    #allocation5 [shape = 'u8[32768]{0}', space=vmem, size = 0x8000, scoped, tag = 'output window, operand 0, single buffered']
    %10 = vsyncpa [#allocation3], 0
    %11 = vsyncpa [#allocation4], 0
    // Predicated region
    $region2: #{tpu_custom_call.1} parent=1 // pred_check
      _
    $region3: #{tpu_custom_call.1} parent=1 // pred_check_branch
      %13 = sbr.rel (0) target = $region5
    $region4: #{tpu_custom_call.1} parent=1 // pred_region
      _
    $region5: #{tpu_custom_call.1} parent=1 // pred_fallthru
      _
    // Predicated region
    $region6: #{tpu_custom_call.1} parent=1 // pred_check
      _
    $region7: #{tpu_custom_call.1} parent=1 // pred_check_branch
      %15 = sbr.rel (0) target = $region9
    $region8: #{tpu_custom_call.1} parent=1 // pred_region
      _
    $region9: #{tpu_custom_call.1} parent=1 // pred_fallthru
      _
    // Predicated region
    $region10: #{tpu_custom_call.1} parent=1 // pred_check
      _
    $region11: #{tpu_custom_call.1} parent=1 // pred_check_branch
      %17 = sbr.rel (0) target = $region13
    $region12: #{tpu_custom_call.1} parent=1 // pred_region
      _
    $region13: #{tpu_custom_call.1} parent=1 // pred_fallthru
      _
    // Predicated region
    $region14: #{tpu_custom_call.1} parent=1 // pred_check
      _
    $region15: #{tpu_custom_call.1} parent=1 // pred_check_branch
      %19 = sbr.rel (0) target = $region17
    $region16: #{tpu_custom_call.1} parent=1 // pred_region
      _
    $region17: #{tpu_custom_call.1} parent=1 // pred_fallthru
      _
    // Predicated region
    $region18: #{tpu_custom_call.1} parent=1 // pred_check
      _
    $region19: #{tpu_custom_call.1} parent=1 // pred_check_branch
      %21 = sbr.rel (0) target = $region21
    $region20: #{tpu_custom_call.1} parent=1 // pred_region
      %23 = vsyncadd [#allocation3], 0
      %s24 = sshll.u32 %s4, 4
      %s25 = int_to_ptr.hbm [resolvable:$true] %s24
      %s26 = sshll.u32 [#allocation2], 4
      %s27 = int_to_ptr.vmem [resolvable:$true] %s26
      %32 = dma.hbm_to_vmem [thread:$0]  %s25, 1024, %s27, [#allocation3], 256, 256, 16
    $region21: #{tpu_custom_call.1} parent=1 // pred_fallthru
      _
    // Predicated region
    $region22: #{tpu_custom_call.1} parent=1 // pred_check
      _
    $region23: #{tpu_custom_call.1} parent=1 // pred_check_branch
      %34 = sbr.rel (0) target = $region25
    $region24: #{tpu_custom_call.1} parent=1 // pred_region
      %36 = dma.done [#allocation3], 1024
    $region25: #{tpu_custom_call.1} parent=1 // pred_fallthru
      _
    %v37 = vld [vmem:[#allocation2] sm:$0xff]
    %v38 = vld [vmem:[#allocation2 + $0x8] sm:$0xff]
    %v39 = vld [vmem:[#allocation2 + $0x10] sm:$0xff]
    %v40 = vld [vmem:[#allocation2 + $0x18] sm:$0xff]
    %v41 = vadd.f32 %v37, %v38
    %42 = vadd.xlane.f32.xlu0 %v41
    %v43 = vpop.xlane.xlu0 %42
    %v44 = vadd.f32 %v39, %v40
    %45 = vadd.xlane.f32.xlu0 %v44
    %v46 = vpop.xlane.xlu0 %45
    %v47 = vadd.f32 %v43, 0.0
    %v48 = vadd.f32 %v46, 0.0
    %v49 = vmul.f32 %v37, %v37
    %v50 = vmul.f32 %v38, %v38
    %v51 = vmul.f32 %v39, %v39
    %v52 = vmul.f32 %v40, %v40
    %v53 = vadd.f32 %v49, %v50
    %54 = vadd.xlane.f32.xlu0 %v53
    %v55 = vpop.xlane.xlu0 %54
    %v56 = vadd.f32 %v51, %v52
    %57 = vadd.xlane.f32.xlu0 %v56
    %v58 = vpop.xlane.xlu0 %57
    %v59 = vadd.f32 %v55, 0.0
    %v60 = vadd.f32 %v58, 0.0
    %s61 = scalar_lea.vmem [#allocation2], 32
    %v62 = vld [vmem:[%s61] sm:$0xff]
    %v63 = vld [vmem:[%s61 + $0x8] sm:$0xff]
    %v64 = vld [vmem:[%s61 + $0x10] sm:$0xff]
    %v65 = vld [vmem:[%s61 + $0x18] sm:$0xff]
    %v66 = vadd.f32 %v62, %v63
    %67 = vadd.xlane.f32.xlu0 %v66
    %v68 = vpop.xlane.xlu0 %67
    %v69 = vadd.f32 %v64, %v65
    %70 = vadd.xlane.f32.xlu0 %v69
    %v71 = vpop.xlane.xlu0 %70
    %v72 = vadd.f32 %v47, %v68
    %v73 = vadd.f32 %v48, %v71
    %v74 = vmul.f32 %v62, %v62
    %v75 = vmul.f32 %v63, %v63
    %v76 = vmul.f32 %v64, %v64
    %v77 = vmul.f32 %v65, %v65
    %v78 = vadd.f32 %v74, %v75
    %79 = vadd.xlane.f32.xlu0 %v78
    %v80 = vpop.xlane.xlu0 %79
    %v81 = vadd.f32 %v76, %v77
    %82 = vadd.xlane.f32.xlu0 %v81
    %v83 = vpop.xlane.xlu0 %82
    %v84 = vadd.f32 %v59, %v80
    %v85 = vadd.f32 %v60, %v83
    %v86 = vmul.f32 %v72, 0.001953125
    %v87 = vmul.f32 %v73, 0.001953125
    %v88 = vmul.f32 %v84, 0.001953125
    %v89 = vmul.f32 %v85, 0.001953125
    %v90 = vmul.f32 %v86, %v86
    %v91 = vmul.f32 %v87, %v87
    %v92 = vsub.f32 %v88, %v90
    %v93 = vsub.f32 %v89, %v91
    %v94 = vmax.f32 %v92, 0.0
    %v95 = vmax.f32 %v93, 0.0
    %v96 = vld [vmem:[%s0] sm:$0xff]
    %v97 = vld [vmem:[%s0 + $0x8] sm:$0xff]
    %v98 = vadd.f32 %v94, 1e-05
    %v99 = vadd.f32 %v95, 1e-05
    %v100 = vrsqrt.pop %v98
    %v101 = vmul.f32 %v100, %v98
    %v102 = vmul.f32 %v101, %v100
    %v103 = vmul.f32 0.5, %v102
    %v104 = vsub.f32 1.5, %v103
    %v105 = vmul.f32 %v100, %v104
    %vm106 = vweird.f32 %v98
    %vm107 = vweird.f32 %v100
    %vm108 = vmor %vm106, %vm107
    %v109 = vsel %vm108, %v100, %v105
    %v110 = vrsqrt.pop %v99
    %v111 = vmul.f32 %v110, %v99
    %v112 = vmul.f32 %v111, %v110
    %v113 = vmul.f32 0.5, %v112
    %v114 = vsub.f32 1.5, %v113
    %v115 = vmul.f32 %v110, %v114
    %vm116 = vweird.f32 %v99
    %vm117 = vweird.f32 %v110
    %vm118 = vmor %vm116, %vm117
    %v119 = vsel %vm118, %v110, %v115
    %v120 = vmul.f32 %v96, %v109
    %v121 = vmul.f32 %v97, %v119
    %v122 = vld [vmem:[%s1] sm:$0xff]
    %v123 = vld [vmem:[%s1 + $0x8] sm:$0xff]
    %v124 = vmul.f32 %v86, %v120
    %v125 = vmul.f32 %v87, %v121
    %v126 = vsub.f32 %v122, %v124
    %v127 = vsub.f32 %v123, %v125
    %v128 = vld [vmem:[%s2] sm:$0xff]
    %v129 = vld [vmem:[%s2 + $0x8] sm:$0xff]
    %v130 = vld [vmem:[%s3] sm:$0xff]
    %v131 = vld [vmem:[%s3 + $0x8] sm:$0xff]
    %133 = vset.pattern.permute.xlu0 0
    %134 = vperm.xlu0 %133, %v120
    %v135 = vpop.permute.xlu0 %134
    %138 = vset.pattern.permute.xlu0 0
    %139 = vperm.xlu0 %138, %v121
    %v140 = vpop.permute.xlu0 %139
    %v142 = vmul.f32 %v37, %v135
    %v143 = vmul.f32 %v38, %v135
    %v144 = vmul.f32 %v39, %v140
    %v145 = vmul.f32 %v40, %v140
    %147 = vset.pattern.permute.xlu0 0
    %148 = vperm.xlu0 %147, %v126
    %v149 = vpop.permute.xlu0 %148
    %152 = vset.pattern.permute.xlu0 0
    %153 = vperm.xlu0 %152, %v127
    %v154 = vpop.permute.xlu0 %153
    %v156 = vadd.f32 %v142, %v149
    %v157 = vadd.f32 %v143, %v149
    %v158 = vadd.f32 %v144, %v154
    %v159 = vadd.f32 %v145, %v154
    %v160 = vmax.f32 %v156, 0.0
    %v161 = vmax.f32 %v157, 0.0
    %v162 = vmax.f32 %v158, 0.0
    %v163 = vmax.f32 %v159, 0.0
    %165 = vset.pattern.permute.xlu0 0
    %166 = vperm.xlu0 %165, %v130
    %v167 = vpop.permute.xlu0 %166
    %170 = vset.pattern.permute.xlu0 0
    %171 = vperm.xlu0 %170, %v131
    %v172 = vpop.permute.xlu0 %171
    %vm174 = vcmask 130048
    %v176 = vsel %vm174, %v128, 0
    %v179 = vsel %vm174, %v129, 0
    %181 = vmatpush.msra.mxu0 0.0
    %182 = vmatpush.msra.mxu0 0.0
    %183 = vmatpush.msra.mxu0 0.0
    %184 = vmatpush.msra.mxu0 0.0
    %185 = vmatpush.msra.mxu0 0.0
    %186 = vmatpush.msra.mxu0 0.0
    %187 = vmatpush.msra.mxu0 0.0
    %188 = vmatpush.msra.mxu0 0.0
    %189 = vmatpush.msra.mxu0 0.0
    %190 = vmatpush.msra.mxu0 0.0
    %191 = vmatpush.msra.mxu0 0.0
    %192 = vmatpush.msra.mxu0 0.0
    %193 = vmatpush.msra.mxu0 0.0
    %194 = vmatpush.msra.mxu0 0.0
    %195 = vmatpush.msra.mxu0 %v162
    %196 = vmatpush.msra.mxu0 %v160
    %197 = vmatmul.f32.gmra.mxu0 %v176
    %v198 = vpop.f32.mrf.mxu0
    %v199 = vadd.f32 %v167, %v198
    %200 = vmatmul.f32.gmra.mxu0 %v179
    %v201 = vpop.f32.mrf.mxu0
    %v202 = vadd.f32 %v172, %v201
    %203 = vdwg.mxu0
    %204 = vmatpush.msra.mxu0 0.0
    %205 = vmatpush.msra.mxu0 0.0
    %206 = vmatpush.msra.mxu0 0.0
    %207 = vmatpush.msra.mxu0 0.0
    %208 = vmatpush.msra.mxu0 0.0
    %209 = vmatpush.msra.mxu0 0.0
    %210 = vmatpush.msra.mxu0 0.0
    %211 = vmatpush.msra.mxu0 0.0
    %212 = vmatpush.msra.mxu0 0.0
    %213 = vmatpush.msra.mxu0 0.0
    %214 = vmatpush.msra.mxu0 0.0
    %215 = vmatpush.msra.mxu0 0.0
    %216 = vmatpush.msra.mxu0 0.0
    %217 = vmatpush.msra.mxu0 0.0
    %218 = vmatpush.msra.mxu0 %v163
    %219 = vmatpush.msra.mxu0 %v161
    %220 = vmatmul.f32.gmra.mxu0 %v176
    %v221 = vpop.f32.mrf.mxu0
    %v222 = vadd.f32 %v167, %v221
    %223 = vmatmul.f32.gmra.mxu0 %v179
    %v224 = vpop.f32.mrf.mxu0
    %v225 = vadd.f32 %v172, %v224
    %226 = vdwg.mxu0
    %227 = vst [vmem:[#allocation5] sm:$0xff] %v199
    %228 = vst [vmem:[#allocation5 + $0x8] sm:$0xff] %v222
    %229 = vst [vmem:[#allocation5 + $0x10] sm:$0xff] %v202
    %230 = vst [vmem:[#allocation5 + $0x18] sm:$0xff] %v225
    %v231 = vld [vmem:[%s61] sm:$0xff]
    %v232 = vld [vmem:[%s61 + $0x8] sm:$0xff]
    %v233 = vld [vmem:[%s61 + $0x10] sm:$0xff]
    %v234 = vld [vmem:[%s61 + $0x18] sm:$0xff]
    %v235 = vmul.f32 %v231, %v135
    %v236 = vmul.f32 %v232, %v135
    %v237 = vmul.f32 %v233, %v140
    %v238 = vmul.f32 %v234, %v140
    %v239 = vadd.f32 %v235, %v149
    %v240 = vadd.f32 %v236, %v149
    %v241 = vadd.f32 %v237, %v154
    %v242 = vadd.f32 %v238, %v154
    %v243 = vmax.f32 %v239, 0.0
    %v244 = vmax.f32 %v240, 0.0
    %v245 = vmax.f32 %v241, 0.0
    %v246 = vmax.f32 %v242, 0.0
    %247 = vmatpush.msra.mxu0 0.0
    %248 = vmatpush.msra.mxu0 0.0
    %249 = vmatpush.msra.mxu0 0.0
    %250 = vmatpush.msra.mxu0 0.0
    %251 = vmatpush.msra.mxu0 0.0
    %252 = vmatpush.msra.mxu0 0.0
    %253 = vmatpush.msra.mxu0 0.0
    %254 = vmatpush.msra.mxu0 0.0
    %255 = vmatpush.msra.mxu0 0.0
    %256 = vmatpush.msra.mxu0 0.0
    %257 = vmatpush.msra.mxu0 0.0
    %258 = vmatpush.msra.mxu0 0.0
    %259 = vmatpush.msra.mxu0 0.0
    %260 = vmatpush.msra.mxu0 0.0
    %261 = vmatpush.msra.mxu0 %v245
    %262 = vmatpush.msra.mxu0 %v243
    %263 = vmatmul.f32.gmra.mxu0 %v176
    %v264 = vpop.f32.mrf.mxu0
    %v265 = vadd.f32 %v167, %v264
    %266 = vmatmul.f32.gmra.mxu0 %v179
    %v267 = vpop.f32.mrf.mxu0
    %v268 = vadd.f32 %v172, %v267
    %269 = vdwg.mxu0
    %270 = vmatpush.msra.mxu0 0.0
    %271 = vmatpush.msra.mxu0 0.0
    %272 = vmatpush.msra.mxu0 0.0
    %273 = vmatpush.msra.mxu0 0.0
    %274 = vmatpush.msra.mxu0 0.0
    %275 = vmatpush.msra.mxu0 0.0
    %276 = vmatpush.msra.mxu0 0.0
    %277 = vmatpush.msra.mxu0 0.0
    %278 = vmatpush.msra.mxu0 0.0
    %279 = vmatpush.msra.mxu0 0.0
    %280 = vmatpush.msra.mxu0 0.0
    %281 = vmatpush.msra.mxu0 0.0
    %282 = vmatpush.msra.mxu0 0.0
    %283 = vmatpush.msra.mxu0 0.0
    %284 = vmatpush.msra.mxu0 %v246
    %285 = vmatpush.msra.mxu0 %v244
    %286 = vmatmul.f32.gmra.mxu0 %v176
    %v287 = vpop.f32.mrf.mxu0
    %v288 = vadd.f32 %v167, %v287
    %289 = vmatmul.f32.gmra.mxu0 %v179
    %v290 = vpop.f32.mrf.mxu0
    %v291 = vadd.f32 %v172, %v290
    %292 = vdwg.mxu0
    %s293 = scalar_lea.vmem [#allocation5], 32
    %294 = vst [vmem:[%s293] sm:$0xff] %v265
    %295 = vst [vmem:[%s293 + $0x8] sm:$0xff] %v288
    %296 = vst [vmem:[%s293 + $0x10] sm:$0xff] %v268
    %297 = vst [vmem:[%s293 + $0x18] sm:$0xff] %v291
    // Predicated region
    $region26: #{tpu_custom_call.1} parent=1 // pred_check
      _
    $region27: #{tpu_custom_call.1} parent=1 // pred_check_branch
      %299 = sbr.rel (0) target = $region29
    $region28: #{tpu_custom_call.1} parent=1 // pred_region
      %301 = vsyncadd [#allocation4], 0
      %s302 = sshll.u32 [#allocation5], 4
      %s303 = int_to_ptr.vmem [resolvable:$true] %s302
      %s304 = sshll.u32 %s5, 4
      %s305 = int_to_ptr.hbm [resolvable:$true] %s304
      %310 = dma.vmem_to_hbm [thread:$0]  %s303, 1024, %s305, [#allocation4], 256, 256, 16
    $region29: #{tpu_custom_call.1} parent=1 // pred_fallthru
      _
    // Predicated region
    $region30: #{tpu_custom_call.1} parent=1 // pred_check
      _
    $region31: #{tpu_custom_call.1} parent=1 // pred_check_branch
      %312 = sbr.rel (0) target = $region33
    $region32: #{tpu_custom_call.1} parent=1 // pred_region
      %314 = dma.done [#allocation4], 1024
    $region33: #{tpu_custom_call.1} parent=1 // pred_fallthru
      _
    %315 = vsyncpa [#allocation3], 1
    %316 = vsyncpa [#allocation4], 1

</llo_original>
